<compile_context>
chip_gen: v5e
topology: v5e:2x2
jax: 0.10.0
libtpu: 0.0.40
codegen_flags: <defaults>
</compile_context>

<pallas_src>
import math

import jax
import jax.numpy as jnp
from jax import lax
from jax.experimental import pallas as pl
from jax.experimental.pallas import tpu as pltpu


_LANES = 128
_CHUNK_ROWS = 256                       # rows per in-kernel sub-chunk
_LATENT_IN_KERNEL_MAX_BYTES = 2 << 20   # larger latents -> wrapper JAX path


def _round_up(x, m):
    return ((x + m - 1) // m) * m


def _vmem_budget():
    """(per-input-buffer DMA tile bytes, physical VMEM bytes)."""
    try:
        phys = int(getattr(pltpu.get_tpu_info(), "vmem_capacity_bytes", 64 << 20))
    except Exception:
        phys = 64 << 20                 # conservative default (v7x per-TC VMEM)
    # 2 inputs x 2 pipeline buffers must stay well inside scoped VMEM:
    # ~40% of physical split over the 4 streaming buffers, clamped to 4-8 MiB.
    per_buf = int(max(4 << 20, min(8 << 20, (phys * 2 // 5) // 4)))
    return per_buf, phys


def _make_kernel(tm, tn, rows, inv_total, latent_cfg):
    """Build the kernel body.  latent_cfg: None or (B, V, lambd, p)."""
    grid_m = pl.cdiv(rows, tm)
    last = grid_m - 1
    valid_last = rows - last * tm       # valid rows in the last block (static)
    need_mask = (valid_last != tm)
    out_s = 8 if tm % 8 == 0 else tm    # sublane height of the partial output

    def lane_fold(s):
        # (out_s, tn) -> (out_s, 128) via static vreg-aligned 128-lane slices
        # (no lane-splitting reshape -> no relayout hazard).
        part = s[:, 0:_LANES]
        for c in range(_LANES, tn, _LANES):
            part = part + s[:, c:c + _LANES]
        return part

    def kernel(*refs):
        if latent_cfg is None:
            rec_ref, inp_ref, out_ref = refs
        else:
            rec_ref, inp_ref, lat_ref, out_ref = refs
        step = pl.program_id(0)

        def piece(r0, nrows, limit):
            # Squared-diff partial over rows [r0, r0+nrows); native dtype in
            # VMEM, upcast to f32 in-register.  `nrows`/`limit` are static.
            rec = rec_ref[pl.ds(r0, nrows), :].astype(jnp.float32)
            inp = inp_ref[pl.ds(r0, nrows), :].astype(jnp.float32)
            d = rec - inp
            if limit is not None:       # mask rows past the valid range
                rid = lax.broadcasted_iota(jnp.int32, (nrows, 1), 0)
                d = jnp.where(rid < limit, d, 0.0)
            sq = d * d
            if nrows > 8 and nrows % 8 == 0:
                # fold sublane groups with pure VPU adds
                return jnp.sum(sq.reshape(nrows // 8, 8, tn), axis=0)
            return sq

        def tile_partial(valid_rows):
            # Sum of squared diffs over the first `valid_rows` (static) rows of
            # this tile, folded to (out_s, tn).
            if out_s != 8:              # tiny single-block path (rows < 8)
                return piece(0, tm, None)
            acc = jnp.zeros((8, tn), jnp.float32)
            nfull = valid_rows // _CHUNK_ROWS
            if nfull > 0:
                def body(c, a):
                    r0 = pl.multiple_of(c * _CHUNK_ROWS, _CHUNK_ROWS)
                    return a + piece(r0, _CHUNK_ROWS, None)
                acc = lax.fori_loop(0, nfull, body, acc)
            rem_start = nfull * _CHUNK_ROWS
            rem_valid = valid_rows - rem_start
            if rem_valid > 0:
                rem_rows = _round_up(rem_valid, 8)
                limit = None if rem_rows == rem_valid else rem_valid
                acc = acc + piece(rem_start, rem_rows, limit)
            return acc

        def store(valid_rows):
            part = lane_fold(tile_partial(valid_rows)) * inv_total
            out_ref[...] = part[None]

        if need_mask:
            # Only the (statically known) last block is ragged -> mask is only
            # paid there; all other blocks take the unmasked path.
            @pl.when(step != last)
            def _():
                store(tm)

            @pl.when(step == last)
            def _():
                store(valid_last)
        else:
            store(tm)

        if latent_cfg is not None:
            batch, vdim, lambd, p = latent_cfg

            @pl.when(step == 0)         # exactly once, regardless of megacore
            def _():
                lat = lat_ref[...].astype(jnp.float32)
                if p == 1.0:
                    row = jnp.sum(jnp.abs(lat), axis=1, keepdims=True)
                elif p == 2.0:
                    row = jnp.sqrt(jnp.sum(lat * lat, axis=1, keepdims=True))
                elif p == round(p) and p > 0.0:
                    a = jnp.abs(lat)
                    ap = a
                    for _ in range(int(p) - 1):   # integer p: repeated VPU muls
                        ap = ap * a
                    row = jnp.sum(ap, axis=1, keepdims=True) ** (1.0 / p)
                else:
                    a = jnp.abs(lat)
                    row = jnp.sum(a ** p, axis=1, keepdims=True) ** (1.0 / p)
                pen = lambd * jnp.sum(row) / (batch * vdim)
                r = lax.broadcasted_iota(jnp.int32, (1, out_s, _LANES), 1)
                c = lax.broadcasted_iota(jnp.int32, (1, out_s, _LANES), 2)
                onehot = ((r == 0) & (c == 0)).astype(jnp.float32)
                out_ref[...] = out_ref[...] + onehot * pen

    return kernel, out_s, grid_m


def loss_penalty(reconstructed, input_, latent, lambd=0.5, norm=1):
    """Scalar loss = MSE(reconstructed, input) + lambd * mean_p_norm(latent)/V."""
    assert latent.ndim == 2
    assert reconstructed.shape == input_.shape
    # TODO(synk): torch allows lambd to be a Tensor (relu().mean()); only the
    # float case is implemented here.

    n_true = int(reconstructed.size)
    B, V = latent.shape
    lambd = float(lambd)
    p = float(norm)
    inv_total = 1.0 / float(n_true)

    rec_flat = jnp.reshape(reconstructed, (-1,))   # bitcast for contiguous inputs
    inp_flat = jnp.reshape(input_, (-1,))

    lat_bytes = int(latent.size) * int(jnp.dtype(latent.dtype).itemsize)
    penalty_in_kernel = (lat_bytes <= _LATENT_IN_KERNEL_MAX_BYTES
                         and math.isfinite(p) and p > 0.0)

    def wrapper_penalty():
        lat = latent.astype(jnp.float32)
        row = jnp.linalg.norm(lat, ord=norm, axis=1)
        return lambd * jnp.mean(row) / V

    # Pick a lane width that divides the element count exactly when possible,
    # so the slab reshape is a pure bitcast (zero extra HBM traffic).
    tn = 512
    for cand in (512, 256, 128):
        if n_true >= cand and n_true % cand == 0:
            tn = cand
            break
    n_main = (n_true // tn) * tn

    if n_main == 0:
        # tiny input: not worth a kernel launch
        d = rec_flat.astype(jnp.float32) - inp_flat.astype(jnp.float32)
        return jnp.sum(d * d) * inv_total + wrapper_penalty()

    rec_item = int(jnp.dtype(reconstructed.dtype).itemsize)
    inp_item = int(jnp.dtype(input_.dtype).itemsize)
    rows = n_main // tn

    # ---- tile / grid selection -------------------------------------------
    per_buf, vmem_phys = _vmem_budget()
    if rows <= 8:
        tm, grid_m = rows, 1
    else:
        tm_target = max(8, _round_up(per_buf // (tn * max(rec_item, inp_item)), 8))
        grid_m = max(pl.cdiv(rows, tm_target), 1)
        # keep >= 8 blocks when possible so v7x megacore splits evenly
        grid_m = max(grid_m, min(8, pl.cdiv(rows, 8)))
        tm = _round_up(pl.cdiv(rows, grid_m), 8)
        grid_m = pl.cdiv(rows, tm)

    latent_cfg = (B, V, lambd, p) if penalty_in_kernel else None
    kernel, out_s, grid_m = _make_kernel(tm, tn, rows, inv_total, latent_cfg)

    # ---- slab construction (no pad; bitcast when aligned) -----------------
    def to_slab(flat):
        if n_main != n_true:
            # TODO(synk): this prefix slice may materialize one copy of the
            # main body when n_true is not a multiple of 128; the < tn element
            # tail is summed in plain JAX below.
            flat = lax.slice(flat, (0,), (n_main,))
        return jnp.reshape(flat, (rows, tn))

    rec2d = to_slab(rec_flat)
    inp2d = to_slab(inp_flat)

    in_specs = [
        pl.BlockSpec((tm, tn), lambda i: (i, 0)),
        pl.BlockSpec((tm, tn), lambda i: (i, 0)),
    ]
    operands = [rec2d, inp2d]
    if penalty_in_kernel:
        in_specs.append(pl.BlockSpec(latent.shape, lambda i: (0, 0)))  # resident
        operands.append(latent)

    out_shape = jax.ShapeDtypeStruct((grid_m, out_s, _LANES), jnp.float32)
    out_specs = pl.BlockSpec((1, out_s, _LANES), lambda i: (i, 0, 0))

    # ---- VMEM budget / cost hint ------------------------------------------
    tile_bytes = tm * tn * (rec_item + inp_item)          # both inputs, 1 buffer
    vmem_need = (2 * tile_bytes                            # x2 pipeline buffers
                 + (2 * lat_bytes if penalty_in_kernel else 0)
                 + 2 * out_s * _LANES * 4
                 + 6 * _CHUNK_ROWS * tn * 4                # f32 chunk temporaries
                 + (2 << 20))                              # margin
    vmem_limit = min(max(32 << 20, int(vmem_need * 1.2)),
                     max(32 << 20, vmem_phys * 3 // 4))

    bytes_accessed = (n_main * (rec_item + inp_item)
                      + (lat_bytes if penalty_in_kernel else 0)
                      + grid_m * out_s * _LANES * 4)
    cost = pl.CostEstimate(flops=3 * n_main + (4 * B * V if penalty_in_kernel else 0),
                           transcendentals=0,
                           bytes_accessed=int(bytes_accessed))

    partials = pl.pallas_call(
        kernel,
        out_shape=out_shape,
        grid_spec=pltpu.PrefetchScalarGridSpec(
            num_scalar_prefetch=0,
            grid=(grid_m,),
            in_specs=in_specs,
            out_specs=out_specs,
        ),
        compiler_params=pltpu.CompilerParams(
            dimension_semantics=("parallel",),
            vmem_limit_bytes=int(vmem_limit),
        ),
        cost_estimate=cost,
    )(*operands)

    total = jnp.sum(partials)           # tiny (grid_m, out_s, 128) final reduce

    if n_main != n_true:                # < tn element tail, pure JAX
        rec_t = lax.slice(rec_flat, (n_main,), (n_true,)).astype(jnp.float32)
        inp_t = lax.slice(inp_flat, (n_main,), (n_true,)).astype(jnp.float32)
        total = total + jnp.sum((rec_t - inp_t) ** 2) * inv_total

    if not penalty_in_kernel:
        total = total + wrapper_penalty()

    return total


def _reference(reconstructed, input_, latent, lambd=0.5, norm=1):
    rec = reconstructed.astype(jnp.float32)
    inp = input_.astype(jnp.float32)
    lat = latent.astype(jnp.float32)
    mse = jnp.mean((rec - inp) ** 2)
    row_norm = jnp.sum(jnp.abs(lat) ** norm, axis=1) ** (1.0 / norm)
    penalty = lambd * jnp.mean(row_norm) / latent.shape[1]
    return mse + penalty


if __name__ == "__main__":
    key = jax.random.PRNGKey(0)
    k1, k2, k3 = jax.random.split(key, 3)

    # Case 1: aligned f32, NCHW reconstructed/input, norm=1 (default).
    B, C, H, W = 2, 4, 16, 16
    V = 32
    reconstructed = jax.random.normal(k1, (B, C, H, W), dtype=jnp.float32)
    input_ = jax.random.normal(k2, (B, C, H, W), dtype=jnp.float32)
    latent = jax.random.normal(k3, (B, V), dtype=jnp.float32)

    out = jax.block_until_ready(loss_penalty(reconstructed, input_, latent,
                                             lambd=0.5, norm=1))
    ref = _reference(reconstructed, input_, latent, lambd=0.5, norm=1)
    assert jnp.allclose(out, ref, rtol=1e-5, atol=1e-5), (out, ref)

    # Case 2: bf16 inputs stay bf16 in HBM; upcast happens inside the kernel.
    rec_bf = reconstructed.astype(jnp.bfloat16)
    inp_bf = input_.astype(jnp.bfloat16)
    lat_bf = latent.astype(jnp.bfloat16)
    out_bf = jax.block_until_ready(loss_penalty(rec_bf, inp_bf, lat_bf,
                                                lambd=0.5, norm=1))
    ref_bf = _reference(rec_bf, inp_bf, lat_bf, lambd=0.5, norm=1)
    assert jnp.allclose(out_bf, ref_bf, rtol=1e-4, atol=1e-4), (out_bf, ref_bf)

    # Case 3: non-aligned size -> in-kernel ragged-block masking + JAX tail,
    # multi-block grid, norm=2 path.
    k4, k5, k6 = jax.random.split(jax.random.PRNGKey(1), 3)
    rec3 = jax.random.normal(k4, (2, 3, 40, 65), dtype=jnp.float32)
    inp3 = jax.random.normal(k5, (2, 3, 40, 65), dtype=jnp.float32)
    lat3 = jax.random.normal(k6, (2, V), dtype=jnp.float32)
    out3 = jax.block_until_ready(loss_penalty(rec3, inp3, lat3, lambd=0.25, norm=2))
    ref3 = _reference(rec3, inp3, lat3, lambd=0.25, norm=2)
    assert jnp.allclose(out3, ref3, rtol=1e-5, atol=1e-5), (out3, ref3)

    print("KERNEL_OK")
</pallas_src>

<mosaic_0001>
module attributes {stable_mosaic.version = 11 : i64} {
  func.func @kernel(%arg0: i32, %arg1: memref<4x512xf32, #tpu.memory_space<vmem>>, %arg2: memref<4x512xf32, #tpu.memory_space<vmem>>, %arg3: memref<2x32xf32, #tpu.memory_space<vmem>>, %arg4: memref<1x4x128xf32, #tpu.memory_space<vmem>>) attributes {dimension_semantics = [#tpu.dimension_semantics<parallel>], iteration_bounds = array<i64: 1>, scalar_prefetch = 0 : i64, scratch_operands = 0 : i64, tpu.core_type = #tpu.core_type<tc>, window_params = [{transform_indices = @transform_0, window_bounds = array<i64: 4, 512>}, {transform_indices = @transform_1, window_bounds = array<i64: 4, 512>}, {pipeline_mode = #tpu.pipeline_mode<synchronous>, transform_indices = @transform_2, window_bounds = array<i64: 2, 32>}, {transform_indices = @transform_3, window_bounds = array<i64: 1, 4, 128>}]} {
    %c0 = arith.constant 0 : index
    %c0_0 = arith.constant 0 : index
    %0 = vector.load %arg1[%c0, %c0_0] : memref<4x512xf32, #tpu.memory_space<vmem>>, vector<4x512xf32>
    %c0_1 = arith.constant 0 : index
    %c0_2 = arith.constant 0 : index
    %1 = vector.load %arg2[%c0_1, %c0_2] : memref<4x512xf32, #tpu.memory_space<vmem>>, vector<4x512xf32>
    %2 = arith.subf %0, %1 : vector<4x512xf32>
    %3 = arith.mulf %2, %2 : vector<4x512xf32>
    %4 = vector.extract_strided_slice %3 {offsets = [0, 0], sizes = [4, 128], strides = [1, 1]} : vector<4x512xf32> to vector<4x128xf32>
    %5 = vector.extract_strided_slice %3 {offsets = [0, 128], sizes = [4, 128], strides = [1, 1]} : vector<4x512xf32> to vector<4x128xf32>
    %6 = arith.addf %4, %5 : vector<4x128xf32>
    %7 = vector.extract_strided_slice %3 {offsets = [0, 256], sizes = [4, 128], strides = [1, 1]} : vector<4x512xf32> to vector<4x128xf32>
    %8 = arith.addf %6, %7 : vector<4x128xf32>
    %9 = vector.extract_strided_slice %3 {offsets = [0, 384], sizes = [4, 128], strides = [1, 1]} : vector<4x512xf32> to vector<4x128xf32>
    %10 = arith.addf %8, %9 : vector<4x128xf32>
    %cst = arith.constant 4.8828125E-4 : f32
    %11 = vector.broadcast %cst : f32 to vector<4x128xf32>
    %12 = arith.mulf %10, %11 : vector<4x128xf32>
    %13 = vector.shape_cast %12 : vector<4x128xf32> to vector<1x4x128xf32>
    %c0_3 = arith.constant 0 : index
    %c0_4 = arith.constant 0 : index
    %c0_5 = arith.constant 0 : index
    %14 = vector.load %arg4[%c0_3, %c0_4, %c0_5] : memref<1x4x128xf32, #tpu.memory_space<vmem>>, vector<1x4x128xf32>
    tpu.vector_store %arg4[%c0_3, %c0_4, %c0_5], %13 {strides = array<i32>} : memref<1x4x128xf32, #tpu.memory_space<vmem>>, vector<1x4x128xf32>,
    %c0_i32 = arith.constant 0 : i32
    %15 = arith.cmpi eq, %arg0, %c0_i32 : i32
    %16 = arith.extui %15 : i1 to i32
    %c0_i32_6 = arith.constant 0 : i32
    %17 = arith.cmpi ne, %16, %c0_i32_6 : i32
    scf.if %17 {
      %c0_7 = arith.constant 0 : index
      %c0_8 = arith.constant 0 : index
      %18 = vector.load %arg3[%c0_7, %c0_8] : memref<2x32xf32, #tpu.memory_space<vmem>>, vector<2x32xf32>
      %19 = math.absf %18 : vector<2x32xf32>
      %cst_9 = arith.constant dense<0.000000e+00> : vector<2xf32>
      %20 = vector.multi_reduction <add>, %19, %cst_9 [1] : vector<2x32xf32> to vector<2xf32>
      %21 = vector.shape_cast %20 : vector<2xf32> to vector<2x1xf32>
      %22 = vector.shape_cast %21 : vector<2x1xf32> to vector<1x2x1xf32>
      %cst_10 = arith.constant dense<0.000000e+00> : vector<1xf32>
      %23 = vector.multi_reduction <add>, %22, %cst_10 [1, 2] : vector<1x2x1xf32> to vector<1xf32>
      %24 = vector.shape_cast %23 : vector<1xf32> to vector<1x1x1xf32>
      %25 = vector.extract %24[0, 0, 0] : f32 from vector<1x1x1xf32>
      %cst_11 = arith.constant 5.000000e-01 : f32
      %26 = arith.mulf %cst_11, %25 : f32
      %cst_12 = arith.constant 6.400000e+01 : f32
      %27 = arith.divf %26, %cst_12 : f32
      %28 = tpu.iota {dimensions = array<i32: 1>} : vector<1x4x128xi32>
      %29 = tpu.iota {dimensions = array<i32: 2>} : vector<1x4x128xi32>
      %c0_i32_13 = arith.constant 0 : i32
      %30 = vector.broadcast %c0_i32_13 : i32 to vector<1x4x128xi32>
      %31 = arith.cmpi eq, %28, %30 : vector<1x4x128xi32>
      %c0_i32_14 = arith.constant 0 : i32
      %32 = vector.broadcast %c0_i32_14 : i32 to vector<1x4x128xi32>
      %33 = arith.cmpi eq, %29, %32 : vector<1x4x128xi32>
      %34 = arith.andi %31, %33 : vector<1x4x128xi1>
      %35 = arith.extui %34 : vector<1x4x128xi1> to vector<1x4x128xi32>
      %36 = arith.sitofp %35 : vector<1x4x128xi32> to vector<1x4x128xf32>
      %c0_15 = arith.constant 0 : index
      %c0_16 = arith.constant 0 : index
      %c0_17 = arith.constant 0 : index
      %37 = vector.load %arg4[%c0_15, %c0_16, %c0_17] : memref<1x4x128xf32, #tpu.memory_space<vmem>>, vector<1x4x128xf32>
      %38 = vector.broadcast %27 : f32 to vector<1x4x128xf32>
      %39 = arith.mulf %36, %38 : vector<1x4x128xf32>
      %40 = arith.addf %37, %39 : vector<1x4x128xf32>
      %c0_18 = arith.constant 0 : index
      %c0_19 = arith.constant 0 : index
      %c0_20 = arith.constant 0 : index
      %41 = vector.load %arg4[%c0_18, %c0_19, %c0_20] : memref<1x4x128xf32, #tpu.memory_space<vmem>>, vector<1x4x128xf32>
      tpu.vector_store %arg4[%c0_18, %c0_19, %c0_20], %40 {strides = array<i32>} : memref<1x4x128xf32, #tpu.memory_space<vmem>>, vector<1x4x128xf32>,
    } else {
    }
    return
  }
  func.func @transform_0(%arg0: i32) -> (i32, i32) {
    %c0_i32 = arith.constant 0 : i32
    %c0_i32_0 = arith.constant 0 : i32
    return %arg0, %c0_i32 : i32, i32
  }
  func.func @transform_1(%arg0: i32) -> (i32, i32) {
    %c0_i32 = arith.constant 0 : i32
    %c0_i32_0 = arith.constant 0 : i32
    return %arg0, %c0_i32 : i32, i32
  }
  func.func @transform_2(%arg0: i32) -> (i32, i32) {
    %c0_i32 = arith.constant 0 : i32
    %c0_i32_0 = arith.constant 0 : i32
    %c0_i32_1 = arith.constant 0 : i32
    return %c0_i32, %c0_i32_0 : i32, i32
  }
  func.func @transform_3(%arg0: i32) -> (i32, i32, i32) {
    %c0_i32 = arith.constant 0 : i32
    %c0_i32_0 = arith.constant 0 : i32
    %c0_i32_1 = arith.constant 0 : i32
    return %arg0, %c0_i32, %c0_i32_0 : i32, i32, i32
  }
}

</mosaic_0001>

<llo_original>
// kernel: tpu_custom_call.1
$region0: #{tpu_custom_call.1}
  #allocation0 [shape = 'u32[]', space=smem, size = 0x4, offset = 0x4, fixed_abs, tag = 'smem constant byte address 0x4 - core index']
  #allocation1 [shape = 'u32[72,128]{1,0:T(1,128)}', space=vmem, size = 0x9000, scoped, tag = 'internal scratch']
  %s0 = inlined_call_operand.hbm [shape: f32[4,512], index: 0, kind: input, shape index: {}]
  %s1 = inlined_call_operand.hbm [shape: f32[4,512], index: 1, kind: input, shape index: {}]
  %s2 = inlined_call_operand.hbm [shape: f32[2,32], index: 2, kind: input, shape index: {}]
  %s3 = inlined_call_operand.hbm [shape: f32[1,4,128], index: 3, kind: output, shape index: {}]
  %s4 = sld [smem:[#allocation0]]
  $region38: #{tpu_custom_call.1} parent=0
    _
  %s6 = ssub.s32 1, %s4
  %s7 = scalar_select 0, %s6, %s4
  $region1: #{tpu_custom_call.1} parent=0
    #allocation2 [shape = 'u8[8192]{0}', space=vmem, size = 0x2000, scoped, tag = 'input window, operand 0, single buffered']
    #allocation3 [shape = 's32[1]{0}', space=sflag, size = 0x4, scoped, tag = 'scoped memory for tpu_custom_call.1']
    #allocation4 [shape = 's32[1]{0}', space=sflag, size = 0x4, scoped, tag = 'scoped memory for tpu_custom_call.1']
    #allocation5 [shape = 'u8[8192]{0}', space=vmem, size = 0x2000, scoped, tag = 'input window, operand 1, single buffered']
    #allocation6 [shape = 's32[1]{0}', space=sflag, size = 0x4, scoped, tag = 'scoped memory for tpu_custom_call.1']
    #allocation7 [shape = 'u8[1024]{0}', space=vmem, size = 0x400, scoped, tag = 'input window, operand 2, single buffered']
    #allocation8 [shape = 'u8[2048]{0}', space=vmem, size = 0x800, scoped, tag = 'output window, operand 0, single buffered']
    %8 = vsyncpa [#allocation3], 0
    %9 = vsyncpa [#allocation6], 0
    %10 = vsyncpa [#allocation4], 0
    // Predicated region
    $region2: #{tpu_custom_call.1} parent=1 // pred_check
      _
    $region3: #{tpu_custom_call.1} parent=1 // pred_check_branch
      %12 = sbr.rel (0) target = $region5
    $region4: #{tpu_custom_call.1} parent=1 // pred_region
      %14 = vsyncadd [#allocation3], 0
      %s16 = sshll.u32 %s0, 4
      %s17 = int_to_ptr.hbm [resolvable:$true] %s16
      %s18 = sshll.u32 [#allocation2], 4
      %s19 = int_to_ptr.vmem [resolvable:$true] %s18
      %21 = dma.hbm_to_vmem [thread:$0]  %s17, 256, %s19, [#allocation3]
    $region5: #{tpu_custom_call.1} parent=1 // pred_fallthru
      _
    // Predicated region
    $region6: #{tpu_custom_call.1} parent=1 // pred_check
      _
    $region7: #{tpu_custom_call.1} parent=1 // pred_check_branch
      %23 = sbr.rel (0) target = $region9
    $region8: #{tpu_custom_call.1} parent=1 // pred_region
      %25 = vsyncadd [#allocation6], 0
      %s27 = sshll.u32 %s1, 4
      %s28 = int_to_ptr.hbm [resolvable:$true] %s27
      %s29 = sshll.u32 [#allocation5], 4
      %s30 = int_to_ptr.vmem [resolvable:$true] %s29
      %32 = dma.hbm_to_vmem [thread:$0]  %s28, 256, %s30, [#allocation6]
    $region9: #{tpu_custom_call.1} parent=1 // pred_fallthru
      _
    // Predicated region
    $region10: #{tpu_custom_call.1} parent=1 // pred_check
      _
    $region11: #{tpu_custom_call.1} parent=1 // pred_check_branch
      %34 = sbr.rel (0) target = $region13
    $region12: #{tpu_custom_call.1} parent=1 // pred_region
      %36 = vsyncadd [#allocation6], 0
      %s38 = sshll.u32 %s2, 4
      %s39 = int_to_ptr.hbm [resolvable:$true] %s38
      %s40 = sshll.u32 [#allocation7], 4
      %s41 = int_to_ptr.vmem [resolvable:$true] %s40
      %43 = dma.hbm_to_vmem [thread:$0]  %s39, 32, %s41, [#allocation6]
    $region13: #{tpu_custom_call.1} parent=1 // pred_fallthru
      _
    // Predicated region
    $region14: #{tpu_custom_call.1} parent=1 // pred_check
      _
    $region15: #{tpu_custom_call.1} parent=1 // pred_check_branch
      %45 = sbr.rel (0) target = $region17
    $region16: #{tpu_custom_call.1} parent=1 // pred_region
      %47 = dma.done [#allocation3], 256
    $region17: #{tpu_custom_call.1} parent=1 // pred_fallthru
      _
    // Predicated region
    $region18: #{tpu_custom_call.1} parent=1 // pred_check
      _
    $region19: #{tpu_custom_call.1} parent=1 // pred_check_branch
      %49 = sbr.rel (0) target = $region21
    $region20: #{tpu_custom_call.1} parent=1 // pred_region
      %51 = dma.done [#allocation6], 256
    $region21: #{tpu_custom_call.1} parent=1 // pred_fallthru
      _
    // Predicated region
    $region22: #{tpu_custom_call.1} parent=1 // pred_check
      _
    $region23: #{tpu_custom_call.1} parent=1 // pred_check_branch
      %53 = sbr.rel (0) target = $region25
    $region24: #{tpu_custom_call.1} parent=1 // pred_region
      %55 = dma.done [#allocation6], 32
    $region25: #{tpu_custom_call.1} parent=1 // pred_fallthru
      _
    %v56 = vld [vmem:[#allocation2] sm:$0xff]
    %v57 = vld [vmem:[#allocation2 + $0x8] sm:$0xff]
    %v58 = vld [vmem:[#allocation5] sm:$0xff]
    %v59 = vld [vmem:[#allocation5 + $0x8] sm:$0xff]
    %v60 = vsub.f32 %v56, %v58
    %v61 = vsub.f32 %v57, %v59
    %v62 = vmul.f32 %v60, %v60
    %v63 = vmul.f32 %v61, %v61
    %v65 = vrot.slane %v62, 4
    %v67 = vadd.f32 %v62, %v65
    %v68 = vadd.f32 %v67, %v63
    %v70 = vrot.slane %v63, 4
    %v72 = vadd.f32 %v68, %v70
    %v73 = vmul.f32 %v72, 0.00048828125
    %74 = vst [vmem:[#allocation8] sm:$0xf] %v73
    %p75 = scmp.eq.s32.totalorder 0, 0
    // Predicated region
    $region26: #{tpu_custom_call.1} parent=1 // pred_check
      %p76 = pneg %p75
    $region27: #{tpu_custom_call.1} parent=1 // pred_check_branch
      %78 = sbr.rel (%p76) target = $region29
    $region28: #{tpu_custom_call.1} parent=1 // pred_region
      %v79 = vld [vmem:[#allocation7] sm:$0x3]
      %v80 = vand.u32 2147483647, %v79
      %vm81 = vcmask 254976
      %v82 = vsel %vm81, %v80, 0.0
      %83 = vadd.xlane.f32.xlu0 %v82
      %v84 = vpop.xlane.xlu0 %83
      %vm85 = vcmask 1024
      %v86 = vsel %vm85, %v84, 0.0
      %87 = vadd.xlane.f32.xlu0 %v86
      %v88 = vpop.xlane.xlu0 %87
      %v89 = vrot.slane %v88, 4
      %v90 = vadd.f32 %v88, %v89
      %v91 = vrot.slane %v90, 2
      %v92 = vadd.f32 %v90, %v91
      %v93 = vrot.slane %v92, 1
      %v94 = vadd.f32 %v92, %v93
      %s95 = vtos %v94
      %s96 = smul.f32 %s95, 0.5
      %v97 = vrcp.pop 64.0
      %v98 = vmul.f32 64.0, %v97
      %v99 = vsub.f32 1.0, %v98
      %v100 = vmul.f32 %v97, %v99
      %v101 = vadd.f32 %v97, %v100
      %vm102 = vweird.f32 %v97
      %v103 = vsel %vm102, %v97, %v101
      %s104 = vtos %v103
      %s105 = smul.f32 %s96, %s104
      %v106 = vlaneseq
      %v107 = vshrl.u32 %v106, 7
      %v108 = vlaneseq
      %v109 = vand.u32 %v108, 127
      %vm110 = vcmp.eq.s32.totalorder %v107, 0
      %vm111 = vcmp.eq.s32.totalorder %v109, 0
      %vm112 = vmand %vm110, %vm111
      %v113 = vsel %vm112, 1, 0
      %v114 = vcvt.s32.f32 %v113
      %v115 = vld [vmem:[#allocation8] sm:$0xf]
      %v116 = vstv %s105
      %v117 = vmul.f32 %v114, %v116
      %v118 = vadd.f32 %v115, %v117
      %119 = vst [vmem:[#allocation8] sm:$0xf] %v118
    $region29: #{tpu_custom_call.1} parent=1 // pred_fallthru
      _
    // Predicated region
    $region30: #{tpu_custom_call.1} parent=1 // pred_check
      _
    $region31: #{tpu_custom_call.1} parent=1 // pred_check_branch
      %121 = sbr.rel (0) target = $region33
    $region32: #{tpu_custom_call.1} parent=1 // pred_region
      %123 = vsyncadd [#allocation4], 0
      %s125 = sshll.u32 [#allocation8], 4
      %s126 = int_to_ptr.vmem [resolvable:$true] %s125
      %s127 = sshll.u32 %s3, 4
      %s128 = int_to_ptr.hbm [resolvable:$true] %s127
      %130 = dma.vmem_to_hbm [thread:$0]  %s126, 64, %s128, [#allocation4]
    $region33: #{tpu_custom_call.1} parent=1 // pred_fallthru
      _
    // Predicated region
    $region34: #{tpu_custom_call.1} parent=1 // pred_check
      _
    $region35: #{tpu_custom_call.1} parent=1 // pred_check_branch
      %132 = sbr.rel (0) target = $region37
    $region36: #{tpu_custom_call.1} parent=1 // pred_region
      %134 = dma.done [#allocation4], 64
    $region37: #{tpu_custom_call.1} parent=1 // pred_fallthru
      _
    %135 = vsyncpa [#allocation3], 1
    %136 = vsyncpa [#allocation6], 1
    %137 = vsyncpa [#allocation4], 1

</llo_original>
